<compile_context>
chip_gen: v7x
topology: tpu7x:2x2x1
jax: 0.10.0
libtpu: 0.0.40
codegen_flags: <defaults>
</compile_context>

<pallas_src>
import functools

import jax
import jax.numpy as jnp
import numpy as np
from jax.experimental import pallas as pl
from jax.experimental.pallas import tpu as pltpu


def _round_up(a, b):
    return ((a + b - 1) // b) * b


def _device_vmem_bytes():
    """Per-core VMEM capacity; conservative (v7x) fallback if query fails."""
    try:
        return int(pltpu.get_tpu_info().vmem_capacity_bytes)
    except Exception:  # pragma: no cover - query unavailable
        return 64 * 1024 * 1024


def _pick_tiles(n, vmem_cap_bytes):
    """(row tile tm, reduction tile tk), tm | tk, sized for the HBM roofline.

    Both kernels are HBM-bound on streaming the bf16 adjacency, so tiles are
    made as large as the VMEM budget allows: big tk amortizes the per-grid-step
    overhead, big tm amortizes re-streaming of the shared K operand.  On v7x
    (64 MiB VMEM, 2 TCs) this yields tm=512 and grid[0] >= 2 for any graph
    large enough for megacore to matter.
    """
    if n <= 1024:
        t = _round_up(max(n, 1), 128)
        return t, t
    budget = int(vmem_cap_bytes * 0.40)            # adj multi-buffer budget
    tm = 1024 if vmem_cap_bytes >= 96 * (1 << 20) else 512
    tk = min(4096, _round_up(n, tm))               # avoid huge padding blowup
    while 3 * tm * tk * 2 > budget and tk > tm:
        tk = max(tm, (tk // 2) // tm * tm)
    while 3 * tm * tk * 2 > budget and tm > 256:
        tm //= 2
    return tm, tk


def _vmem_limit_bytes(tm, tk, k_width_bytes, vmem_cap_bytes):
    need = (3 * tm * tk * 2                 # adjacency multi-buffer
            + 2 * tk * k_width_bytes        # shared K operand double-buffer
            + 12 * (1 << 20))               # weights, outputs, scratch, slack
    return int(min(max(need, 32 * (1 << 20)), int(0.9 * vmem_cap_bytes)))


# ---------------------------------------------------------------------------
# Kernel A: SAGEConv layer 1 (+ ReLU) and the layer-2 weight projections.
#   agg1 = adj @ x[ @W1l ]              (accumulated over K blocks, f32)
#   h    = relu(agg1 [@ W1l] + b1 + x @ W1r)
#   hl   = h @ W2l          (bf16, aggregation input for kernel B)
#   hrb  = h @ W2r + b2     (bf16, self term for kernel B)
# ---------------------------------------------------------------------------
def _layer1_epilogue(h, w2l_ref, w2r_ref, b2_ref, hl_ref, hrb_ref):
    h = jnp.maximum(h, 0.0)                 # ReLU (dropout = identity, eval)
    hb = h.astype(jnp.bfloat16)
    hl_ref[...] = jnp.dot(hb, w2l_ref[...],
                          preferred_element_type=jnp.float32
                          ).astype(jnp.bfloat16)
    hrb_ref[...] = (jnp.dot(hb, w2r_ref[...],
                            preferred_element_type=jnp.float32)
                    + b2_ref[...]).astype(jnp.bfloat16)


def sage_layer1_kernel(adj_ref, xk_ref, xi_ref,
                       w1l_ref, w1r_ref, b1_ref,
                       w2l_ref, w2r_ref, b2_ref,
                       hl_ref, hrb_ref, acc_ref):
    """in_dim <= hidden: aggregate raw x, apply W1l in the epilogue."""
    k = pl.program_id(1)

    @pl.when(k == 0)
    def _():
        acc_ref[...] = jnp.zeros_like(acc_ref)

    acc_ref[...] += jnp.dot(adj_ref[...], xk_ref[...],
                            preferred_element_type=jnp.float32)

    @pl.when(k == pl.num_programs(1) - 1)
    def _():
        h = (jnp.dot(acc_ref[...].astype(jnp.bfloat16), w1l_ref[...],
                     preferred_element_type=jnp.float32)
             + b1_ref[...]
             + jnp.dot(xi_ref[...], w1r_ref[...],
                       preferred_element_type=jnp.float32))
        _layer1_epilogue(h, w2l_ref, w2r_ref, b2_ref, hl_ref, hrb_ref)


def sage_layer1_folded_kernel(adj_ref, xlk_ref, xrb_ref,
                              w2l_ref, w2r_ref, b2_ref,
                              hl_ref, hrb_ref, acc_ref):
    """in_dim > hidden: aggregate pre-projected x@W1l; xrb = x@W1r + b1."""
    k = pl.program_id(1)

    @pl.when(k == 0)
    def _():
        acc_ref[...] = jnp.zeros_like(acc_ref)

    acc_ref[...] += jnp.dot(adj_ref[...], xlk_ref[...],
                            preferred_element_type=jnp.float32)

    @pl.when(k == pl.num_programs(1) - 1)
    def _():
        h = acc_ref[...] + xrb_ref[...]
        _layer1_epilogue(h, w2l_ref, w2r_ref, b2_ref, hl_ref, hrb_ref)


# ---------------------------------------------------------------------------
# Kernel B: SAGEConv layer 2 aggregation (narrow gnn_out width), predictor
#           MLP, lane-dense logits, and per-row-block masked BCE partials.
#   emb = (adj @ hl) + hrb
#   p   = relu(emb @ Wp1 + bp1)
#   z   = p @ Wp2 + bp2
# ---------------------------------------------------------------------------
def sage_layer2_pred_kernel(adj_ref, hl_ref, hrb_ref,
                            wp1_ref, bp1_ref, wp2_ref, bp2_ref,
                            mask_ref, labels_ref,
                            logits_ref, lpart_ref, acc_ref, *, out_dim):
    k = pl.program_id(1)

    @pl.when(k == 0)
    def _():
        acc_ref[...] = jnp.zeros_like(acc_ref)

    acc_ref[...] += jnp.dot(adj_ref[...], hl_ref[...],
                            preferred_element_type=jnp.float32)

    @pl.when(k == pl.num_programs(1) - 1)
    def _():
        emb = acc_ref[...] + hrb_ref[...].astype(jnp.float32)
        p = (jnp.dot(emb.astype(jnp.bfloat16), wp1_ref[...],
                     preferred_element_type=jnp.float32) + bp1_ref[...])
        p = jnp.maximum(p, 0.0)             # ReLU (dropout = identity, eval)
        z = (jnp.dot(p.astype(jnp.bfloat16), wp2_ref[...],
                     preferred_element_type=jnp.float32) + bp2_ref[...])
        logits_ref[...] = z

        # masked BCE-with-logits, numerically stable form (f32 epilogue).
        y = labels_ref[...].astype(jnp.float32)        # (tm, OUTP), 0-padded
        m = mask_ref[...]                              # (tm, 1) float {0,1}
        lane = jax.lax.broadcasted_iota(jnp.int32, z.shape, 1)
        lane_valid = (lane < out_dim).astype(jnp.float32)
        elem = jnp.maximum(z, 0.0) - z * y + jnp.log1p(jnp.exp(-jnp.abs(z)))
        wsum = jnp.sum(elem * lane_valid * m)
        cnt = jnp.sum(m) * jnp.float32(out_dim)

        row = jax.lax.broadcasted_iota(jnp.int32, lpart_ref.shape, 0)
        col = jax.lax.broadcasted_iota(jnp.int32, lpart_ref.shape, 1)
        lpart_ref[...] = jnp.where((row == 0) & (col == 0), wsum,
                                   jnp.where((row == 0) & (col == 1), cnt, 0.0))


# ---------------------------------------------------------------------------
# Wrapper: bf16 normalized adjacency, padding, tiling, pallas_call plumbing.
# ---------------------------------------------------------------------------
def graphsage_client_forward(x, edge_index, train_mask, target_labels, params):
    n, in_dim = x.shape
    hid = params["w1l"].shape[1]
    gout = params["w2l"].shape[1]
    predh = params["wp1"].shape[1]
    out_dim = params["wp2"].shape[1]

    OUTP = _round_up(out_dim, 128)          # lane-dense padded logits width

    vmem_cap = _device_vmem_bytes()
    tm, tk = _pick_tiles(n, vmem_cap)
    npad = _round_up(n, tk)                 # tm | tk  =>  tm | npad
    grid = (npad // tm, npad // tk)

    # Dense row-normalized adjacency, built directly in bf16 (no f32 N^2
    # intermediate): deg counts messages per destination, scatter 1/deg.
    src, dst = edge_index[0], edge_index[1]
    deg = jnp.zeros((npad,), jnp.float32).at[dst].add(1.0)
    inv_deg = jnp.where(deg > 0, 1.0 / jnp.maximum(deg, 1.0), 0.0)
    adj = jnp.zeros((npad, npad), jnp.bfloat16).at[dst, src].add(
        inv_deg[dst].astype(jnp.bfloat16))

    maskp = jnp.zeros((npad, 1), jnp.float32).at[:n, 0].set(
        train_mask.astype(jnp.float32))
    labelsp = jnp.zeros((npad, OUTP), jnp.bfloat16).at[:n, :out_dim].set(
        target_labels.astype(jnp.bfloat16))

    # Weights (bf16 MXU operands); gnn_out width kept un-padded, logits padded.
    w2l = params["w2l"].astype(jnp.bfloat16)               # (hid, gout)
    w2r = params["w2r"].astype(jnp.bfloat16)
    b2 = params["b2"]                                      # (1, gout) f32
    wp1 = params["wp1"].astype(jnp.bfloat16)               # (gout, predh)
    bp1 = params["bp1"]
    wp2 = jnp.zeros((predh, OUTP), jnp.float32).at[:, :out_dim].set(
        params["wp2"]).astype(jnp.bfloat16)
    bp2 = jnp.zeros((1, OUTP), jnp.float32).at[:, :out_dim].set(params["bp2"])

    fold_w1 = in_dim > hid                 # run the N^2 matmul at min width
    agg_w = hid if fold_w1 else in_dim
    k_width_bytes = 2 * max(agg_w, gout)
    cparams = pltpu.CompilerParams(
        dimension_semantics=("parallel", "arbitrary"),
        vmem_limit_bytes=_vmem_limit_bytes(tm, tk, k_width_bytes, vmem_cap),
    )

    # ---- kernel A: layer 1 + layer-2 weight projections --------------------
    if fold_w1:
        xf = x.astype(jnp.float32)
        xl = jnp.zeros((npad, hid), jnp.bfloat16).at[:n].set(
            (xf @ params["w1l"]).astype(jnp.bfloat16))
        xrb = jnp.zeros((npad, hid), jnp.float32).at[:n].set(
            xf @ params["w1r"] + params["b1"])
        kernel_a = sage_layer1_folded_kernel
        a_args = (adj, xl, xrb, w2l, w2r, b2)
        a_in_specs = [
            pl.BlockSpec((tm, tk), lambda i, k: (i, k)),         # adj
            pl.BlockSpec((tk, hid), lambda i, k: (k, 0)),        # x @ W1l
            pl.BlockSpec((tm, hid), lambda i, k: (i, 0)),        # x @ W1r + b1
            pl.BlockSpec((hid, gout), lambda i, k: (0, 0)),      # W2l
            pl.BlockSpec((hid, gout), lambda i, k: (0, 0)),      # W2r
            pl.BlockSpec((1, gout), lambda i, k: (0, 0)),        # b2
        ]
        flops_a = 2 * npad * npad * hid + 4 * npad * hid * gout
    else:
        xp = jnp.zeros((npad, in_dim), jnp.bfloat16).at[:n].set(
            x.astype(jnp.bfloat16))
        w1l = params["w1l"].astype(jnp.bfloat16)
        w1r = params["w1r"].astype(jnp.bfloat16)
        b1 = params["b1"]
        kernel_a = sage_layer1_kernel
        a_args = (adj, xp, xp, w1l, w1r, b1, w2l, w2r, b2)
        a_in_specs = [
            pl.BlockSpec((tm, tk), lambda i, k: (i, k)),         # adj
            pl.BlockSpec((tk, in_dim), lambda i, k: (k, 0)),     # x (neighbors)
            pl.BlockSpec((tm, in_dim), lambda i, k: (i, 0)),     # x (self)
            pl.BlockSpec((in_dim, hid), lambda i, k: (0, 0)),    # W1l
            pl.BlockSpec((in_dim, hid), lambda i, k: (0, 0)),    # W1r
            pl.BlockSpec((1, hid), lambda i, k: (0, 0)),         # b1
            pl.BlockSpec((hid, gout), lambda i, k: (0, 0)),      # W2l
            pl.BlockSpec((hid, gout), lambda i, k: (0, 0)),      # W2r
            pl.BlockSpec((1, gout), lambda i, k: (0, 0)),        # b2
        ]
        flops_a = (2 * npad * npad * in_dim + 4 * npad * in_dim * hid
                   + 4 * npad * hid * gout)

    ce_a = pl.CostEstimate(
        flops=int(flops_a),
        transcendentals=0,
        bytes_accessed=int(npad * npad * 2
                           + grid[0] * npad * agg_w * 2     # re-streamed K op
                           + npad * agg_w * 4               # self operand
                           + npad * gout * 4                # hl + hrb (bf16)
                           + 4 * (in_dim * hid + hid * gout) * 2),
    )
    hl, hrb = pl.pallas_call(
        kernel_a,
        out_shape=(
            jax.ShapeDtypeStruct((npad, gout), jnp.bfloat16),
            jax.ShapeDtypeStruct((npad, gout), jnp.bfloat16),
        ),
        grid_spec=pltpu.PrefetchScalarGridSpec(
            num_scalar_prefetch=0,
            grid=grid,
            in_specs=a_in_specs,
            out_specs=(
                pl.BlockSpec((tm, gout), lambda i, k: (i, 0)),   # hl
                pl.BlockSpec((tm, gout), lambda i, k: (i, 0)),   # hrb
            ),
            scratch_shapes=[pltpu.VMEM((tm, agg_w), jnp.float32)],
        ),
        compiler_params=cparams,
        cost_estimate=ce_a,
    )(*a_args)

    # ---- kernel B: layer-2 aggregation + predictor + masked BCE ------------
    ce_b = pl.CostEstimate(
        flops=int(2 * npad * npad * gout + 2 * npad * gout * predh
                  + 2 * npad * predh * OUTP + 12 * npad * OUTP),
        transcendentals=int(2 * npad * OUTP),
        bytes_accessed=int(npad * npad * 2
                           + grid[0] * npad * gout * 2      # re-streamed hl
                           + npad * (gout * 2 + OUTP * 2 + OUTP * 4 + 4)
                           + 2 * (gout * predh + predh * OUTP)),
    )
    logits_p, lparts = pl.pallas_call(
        functools.partial(sage_layer2_pred_kernel, out_dim=out_dim),
        out_shape=(
            jax.ShapeDtypeStruct((npad, OUTP), jnp.float32),
            jax.ShapeDtypeStruct((grid[0] * 8, 128), jnp.float32),
        ),
        grid_spec=pltpu.PrefetchScalarGridSpec(
            num_scalar_prefetch=0,
            grid=grid,
            in_specs=[
                pl.BlockSpec((tm, tk), lambda i, k: (i, k)),       # adj
                pl.BlockSpec((tk, gout), lambda i, k: (k, 0)),     # hl
                pl.BlockSpec((tm, gout), lambda i, k: (i, 0)),     # hrb
                pl.BlockSpec((gout, predh), lambda i, k: (0, 0)),  # Wp1
                pl.BlockSpec((1, predh), lambda i, k: (0, 0)),     # bp1
                pl.BlockSpec((predh, OUTP), lambda i, k: (0, 0)),  # Wp2
                pl.BlockSpec((1, OUTP), lambda i, k: (0, 0)),      # bp2
                pl.BlockSpec((tm, 1), lambda i, k: (i, 0)),        # mask
                pl.BlockSpec((tm, OUTP), lambda i, k: (i, 0)),     # labels
            ],
            out_specs=(
                pl.BlockSpec((tm, OUTP), lambda i, k: (i, 0)),     # logits
                pl.BlockSpec((8, 128), lambda i, k: (i, 0)),       # loss parts
            ),
            scratch_shapes=[pltpu.VMEM((tm, gout), jnp.float32)],
        ),
        compiler_params=cparams,
        cost_estimate=ce_b,
    )(adj, hl, hrb, wp1, bp1, wp2, bp2, maskp, labelsp)

    logits = logits_p[:n, :out_dim]
    loss = jnp.sum(lparts[:, 0]) / jnp.maximum(jnp.sum(lparts[:, 1]), 1.0)
    return logits, loss


# ---------------------------------------------------------------------------
# Pure-JAX reference (f32) for validation, and parameter init.
# ---------------------------------------------------------------------------
def _reference_forward(x, edge_index, train_mask, target_labels, params):
    n = x.shape[0]
    src, dst = edge_index[0], edge_index[1]
    adj = jnp.zeros((n, n), jnp.float32).at[dst, src].add(1.0)
    deg = jnp.sum(adj, axis=1, keepdims=True)
    adj = jnp.where(deg > 0, adj / jnp.maximum(deg, 1.0), 0.0)
    xf = x.astype(jnp.float32)
    h = adj @ xf @ params["w1l"] + params["b1"] + xf @ params["w1r"]
    h = jnp.maximum(h, 0.0)
    emb = adj @ h @ params["w2l"] + params["b2"] + h @ params["w2r"]
    p = jnp.maximum(emb @ params["wp1"] + params["bp1"], 0.0)
    z = p @ params["wp2"] + params["bp2"]
    y = target_labels.astype(jnp.float32)
    m = train_mask.astype(jnp.float32)[:, None]
    elem = jnp.maximum(z, 0.0) - z * y + jnp.log1p(jnp.exp(-jnp.abs(z)))
    loss = jnp.sum(elem * m) / jnp.maximum(jnp.sum(m) * y.shape[1], 1.0)
    return z, loss


def init_params(key, in_dim, gnn_hidden_dim, gnn_out_dim, pred_hidden_dim, out_dim):
    ks = jax.random.split(key, 6)

    def glorot(k, shape):
        scale = jnp.sqrt(2.0 / (shape[0] + shape[1]))
        return jax.random.normal(k, shape, jnp.float32) * scale

    return {
        # SAGEConv 1: lin_l (with bias) on aggregated neighbors, lin_r on self
        "w1l": glorot(ks[0], (in_dim, gnn_hidden_dim)),
        "w1r": glorot(ks[1], (in_dim, gnn_hidden_dim)),
        "b1": jnp.zeros((1, gnn_hidden_dim), jnp.float32),
        # SAGEConv 2
        "w2l": glorot(ks[2], (gnn_hidden_dim, gnn_out_dim)),
        "w2r": glorot(ks[3], (gnn_hidden_dim, gnn_out_dim)),
        "b2": jnp.zeros((1, gnn_out_dim), jnp.float32),
        # Predictor MLP
        "wp1": glorot(ks[4], (gnn_out_dim, pred_hidden_dim)),
        "bp1": jnp.zeros((1, pred_hidden_dim), jnp.float32),
        "wp2": glorot(ks[5], (pred_hidden_dim, out_dim)),
        "bp2": jnp.zeros((1, out_dim), jnp.float32),
    }


if __name__ == "__main__":
    def run_case(case_key, num_nodes, num_edges, in_dim, hid, gout, predh, out_dim):
        k_x, k_e, k_lbl, k_p = jax.random.split(case_key, 4)
        x = jax.random.normal(k_x, (num_nodes, in_dim), jnp.float32)
        edge_index = jax.random.randint(k_e, (2, num_edges), 0, num_nodes,
                                        jnp.int32)
        train_mask = jnp.arange(num_nodes) < (num_nodes // 2)      # [N] bool
        target_labels = (jax.random.uniform(k_lbl, (num_nodes, out_dim)) > 0.5
                         ).astype(jnp.float32)                      # multi-label
        params = init_params(k_p, in_dim, hid, gout, predh, out_dim)

        logits, loss = graphsage_client_forward(x, edge_index, train_mask,
                                                target_labels, params)
        jax.block_until_ready((logits, loss))
        assert logits.shape == (num_nodes, out_dim)
        assert loss.shape == ()
        assert bool(jnp.isfinite(loss))

        ref_logits, ref_loss = _reference_forward(x, edge_index, train_mask,
                                                  target_labels, params)
        np.testing.assert_allclose(np.asarray(logits), np.asarray(ref_logits),
                                   rtol=0.1, atol=0.1)
        np.testing.assert_allclose(float(loss), float(ref_loss),
                                   rtol=0.1, atol=0.1)

    key = jax.random.PRNGKey(0)
    k1, k2 = jax.random.split(key)
    # Case 1: in_dim <= gnn_hidden  -> un-folded layer-1 kernel path.
    run_case(k1, 16, 40, 8, 32, 16, 32, 4)
    # Case 2: in_dim  > gnn_hidden  -> folded (x@W1 pre-projected) path.
    run_case(k2, 24, 60, 64, 32, 16, 32, 4)
    print("KERNEL_OK")
</pallas_src>

<mosaic_0001>
module attributes {stable_mosaic.version = 11 : i64} {
  func.func @sage_layer1_kernel(%arg0: i32, %arg1: i32, %arg2: memref<128x128xbf16, #tpu.memory_space<vmem>>, %arg3: memref<128x8xbf16, #tpu.memory_space<vmem>>, %arg4: memref<128x8xbf16, #tpu.memory_space<vmem>>, %arg5: memref<8x32xbf16, #tpu.memory_space<vmem>>, %arg6: memref<8x32xbf16, #tpu.memory_space<vmem>>, %arg7: memref<1x32xf32, #tpu.memory_space<vmem>>, %arg8: memref<32x16xbf16, #tpu.memory_space<vmem>>, %arg9: memref<32x16xbf16, #tpu.memory_space<vmem>>, %arg10: memref<1x16xf32, #tpu.memory_space<vmem>>, %arg11: memref<128x16xbf16, #tpu.memory_space<vmem>>, %arg12: memref<128x16xbf16, #tpu.memory_space<vmem>>, %arg13: memref<128x8xf32, #tpu.memory_space<vmem>>) attributes {dimension_semantics = [#tpu.dimension_semantics<parallel>, #tpu.dimension_semantics<arbitrary>], iteration_bounds = array<i64: 1, 1>, scalar_prefetch = 0 : i64, scratch_operands = 1 : i64, tpu.core_type = #tpu.core_type<tc>, window_params = [{transform_indices = @transform_0, window_bounds = array<i64: 128, 128>}, {transform_indices = @transform_1, window_bounds = array<i64: 128, 8>}, {transform_indices = @transform_2, window_bounds = array<i64: 128, 8>}, {pipeline_mode = #tpu.pipeline_mode<synchronous>, transform_indices = @transform_3, window_bounds = array<i64: 8, 32>}, {pipeline_mode = #tpu.pipeline_mode<synchronous>, transform_indices = @transform_4, window_bounds = array<i64: 8, 32>}, {pipeline_mode = #tpu.pipeline_mode<synchronous>, transform_indices = @transform_5, window_bounds = array<i64: 1, 32>}, {pipeline_mode = #tpu.pipeline_mode<synchronous>, transform_indices = @transform_6, window_bounds = array<i64: 32, 16>}, {pipeline_mode = #tpu.pipeline_mode<synchronous>, transform_indices = @transform_7, window_bounds = array<i64: 32, 16>}, {pipeline_mode = #tpu.pipeline_mode<synchronous>, transform_indices = @transform_8, window_bounds = array<i64: 1, 16>}, {transform_indices = @transform_9, window_bounds = array<i64: 128, 16>}, {transform_indices = @transform_10, window_bounds = array<i64: 128, 16>}]} {
    %c0_i32 = arith.constant 0 : i32
    %0 = arith.cmpi eq, %arg1, %c0_i32 : i32
    %1 = arith.extui %0 : i1 to i32
    %c0_i32_0 = arith.constant 0 : i32
    %2 = arith.cmpi ne, %1, %c0_i32_0 : i32
    scf.if %2 {
      %cst_10 = arith.constant 0.000000e+00 : f32
      %12 = vector.broadcast %cst_10 : f32 to vector<128x8xf32>
      %c0_11 = arith.constant 0 : index
      %c0_12 = arith.constant 0 : index
      %13 = vector.load %arg13[%c0_11, %c0_12] : memref<128x8xf32, #tpu.memory_space<vmem>>, vector<128x8xf32>
      tpu.vector_store %arg13[%c0_11, %c0_12], %12 {strides = array<i32>} : memref<128x8xf32, #tpu.memory_space<vmem>>, vector<128x8xf32>,
    } else {
    }
    %c0 = arith.constant 0 : index
    %c0_1 = arith.constant 0 : index
    %3 = vector.load %arg13[%c0, %c0_1] : memref<128x8xf32, #tpu.memory_space<vmem>>, vector<128x8xf32>
    %c0_2 = arith.constant 0 : index
    %c0_3 = arith.constant 0 : index
    %4 = vector.load %arg2[%c0_2, %c0_3] : memref<128x128xbf16, #tpu.memory_space<vmem>>, vector<128x128xbf16>
    %c0_4 = arith.constant 0 : index
    %c0_5 = arith.constant 0 : index
    %5 = vector.load %arg3[%c0_4, %c0_5] : memref<128x8xbf16, #tpu.memory_space<vmem>>, vector<128x8xbf16>
    %cst = arith.constant dense<0.000000e+00> : vector<128x8xf32>
    %6 = tpu.matmul %4, %5, %cst {dimension_numbers = #tpu.dot_dimension_numbers<[1], [0], [0], [1], [0, 0, 1, 1], [], []>} : vector<128x128xbf16>, vector<128x8xbf16>, vector<128x8xf32> -> vector<128x8xf32>
    %7 = arith.addf %3, %6 : vector<128x8xf32>
    %c0_6 = arith.constant 0 : index
    %c0_7 = arith.constant 0 : index
    %8 = vector.load %arg13[%c0_6, %c0_7] : memref<128x8xf32, #tpu.memory_space<vmem>>, vector<128x8xf32>
    tpu.vector_store %arg13[%c0_6, %c0_7], %7 {strides = array<i32>} : memref<128x8xf32, #tpu.memory_space<vmem>>, vector<128x8xf32>,
    %c0_i32_8 = arith.constant 0 : i32
    %9 = arith.cmpi eq, %arg1, %c0_i32_8 : i32
    %10 = arith.extui %9 : i1 to i32
    %c0_i32_9 = arith.constant 0 : i32
    %11 = arith.cmpi ne, %10, %c0_i32_9 : i32
    scf.if %11 {
      %c0_10 = arith.constant 0 : index
      %c0_11 = arith.constant 0 : index
      %12 = vector.load %arg13[%c0_10, %c0_11] : memref<128x8xf32, #tpu.memory_space<vmem>>, vector<128x8xf32>
      %13 = arith.truncf %12 : vector<128x8xf32> to vector<128x8xbf16>
      %c0_12 = arith.constant 0 : index
      %c0_13 = arith.constant 0 : index
      %14 = vector.load %arg5[%c0_12, %c0_13] : memref<8x32xbf16, #tpu.memory_space<vmem>>, vector<8x32xbf16>
      %cst_14 = arith.constant dense<0.000000e+00> : vector<128x32xf32>
      %15 = tpu.matmul %13, %14, %cst_14 {dimension_numbers = #tpu.dot_dimension_numbers<[1], [0], [0], [1], [0, 0, 1, 1], [], []>} : vector<128x8xbf16>, vector<8x32xbf16>, vector<128x32xf32> -> vector<128x32xf32>
      %c0_15 = arith.constant 0 : index
      %c0_16 = arith.constant 0 : index
      %16 = vector.load %arg7[%c0_15, %c0_16] : memref<1x32xf32, #tpu.memory_space<vmem>>, vector<1x32xf32>
      %17 = vector.broadcast %16 : vector<1x32xf32> to vector<128x32xf32>
      %18 = arith.addf %15, %17 : vector<128x32xf32>
      %c0_17 = arith.constant 0 : index
      %c0_18 = arith.constant 0 : index
      %19 = vector.load %arg4[%c0_17, %c0_18] : memref<128x8xbf16, #tpu.memory_space<vmem>>, vector<128x8xbf16>
      %c0_19 = arith.constant 0 : index
      %c0_20 = arith.constant 0 : index
      %20 = vector.load %arg6[%c0_19, %c0_20] : memref<8x32xbf16, #tpu.memory_space<vmem>>, vector<8x32xbf16>
      %cst_21 = arith.constant dense<0.000000e+00> : vector<128x32xf32>
      %21 = tpu.matmul %19, %20, %cst_21 {dimension_numbers = #tpu.dot_dimension_numbers<[1], [0], [0], [1], [0, 0, 1, 1], [], []>} : vector<128x8xbf16>, vector<8x32xbf16>, vector<128x32xf32> -> vector<128x32xf32>
      %22 = arith.addf %18, %21 : vector<128x32xf32>
      %cst_22 = arith.constant 0.000000e+00 : f32
      %23 = vector.broadcast %cst_22 : f32 to vector<128x32xf32>
      %24 = arith.maximumf %22, %23 : vector<128x32xf32>
      %25 = arith.truncf %24 : vector<128x32xf32> to vector<128x32xbf16>
      %c0_23 = arith.constant 0 : index
      %c0_24 = arith.constant 0 : index
      %26 = vector.load %arg8[%c0_23, %c0_24] : memref<32x16xbf16, #tpu.memory_space<vmem>>, vector<32x16xbf16>
      %cst_25 = arith.constant dense<0.000000e+00> : vector<128x16xf32>
      %27 = tpu.matmul %25, %26, %cst_25 {dimension_numbers = #tpu.dot_dimension_numbers<[1], [0], [0], [1], [0, 0, 1, 1], [], []>} : vector<128x32xbf16>, vector<32x16xbf16>, vector<128x16xf32> -> vector<128x16xf32>
      %28 = arith.truncf %27 : vector<128x16xf32> to vector<128x16xbf16>
      %c0_26 = arith.constant 0 : index
      %c0_27 = arith.constant 0 : index
      %29 = vector.load %arg11[%c0_26, %c0_27] : memref<128x16xbf16, #tpu.memory_space<vmem>>, vector<128x16xbf16>
      tpu.vector_store %arg11[%c0_26, %c0_27], %28 {strides = array<i32>} : memref<128x16xbf16, #tpu.memory_space<vmem>>, vector<128x16xbf16>,
      %c0_28 = arith.constant 0 : index
      %c0_29 = arith.constant 0 : index
      %30 = vector.load %arg9[%c0_28, %c0_29] : memref<32x16xbf16, #tpu.memory_space<vmem>>, vector<32x16xbf16>
      %cst_30 = arith.constant dense<0.000000e+00> : vector<128x16xf32>
      %31 = tpu.matmul %25, %30, %cst_30 {dimension_numbers = #tpu.dot_dimension_numbers<[1], [0], [0], [1], [0, 0, 1, 1], [], []>} : vector<128x32xbf16>, vector<32x16xbf16>, vector<128x16xf32> -> vector<128x16xf32>
      %c0_31 = arith.constant 0 : index
      %c0_32 = arith.constant 0 : index
      %32 = vector.load %arg10[%c0_31, %c0_32] : memref<1x16xf32, #tpu.memory_space<vmem>>, vector<1x16xf32>
      %33 = vector.broadcast %32 : vector<1x16xf32> to vector<128x16xf32>
      %34 = arith.addf %31, %33 : vector<128x16xf32>
      %35 = arith.truncf %34 : vector<128x16xf32> to vector<128x16xbf16>
      %c0_33 = arith.constant 0 : index
      %c0_34 = arith.constant 0 : index
      %36 = vector.load %arg12[%c0_33, %c0_34] : memref<128x16xbf16, #tpu.memory_space<vmem>>, vector<128x16xbf16>
      tpu.vector_store %arg12[%c0_33, %c0_34], %35 {strides = array<i32>} : memref<128x16xbf16, #tpu.memory_space<vmem>>, vector<128x16xbf16>,
    } else {
    }
    return
  }
  func.func @transform_0(%arg0: i32, %arg1: i32) -> (i32, i32) {
    %c0_i32 = arith.constant 0 : i32
    return %arg0, %arg1 : i32, i32
  }
  func.func @transform_1(%arg0: i32, %arg1: i32) -> (i32, i32) {
    %c0_i32 = arith.constant 0 : i32
    %c0_i32_0 = arith.constant 0 : i32
    return %arg1, %c0_i32 : i32, i32
  }
  func.func @transform_2(%arg0: i32, %arg1: i32) -> (i32, i32) {
    %c0_i32 = arith.constant 0 : i32
    %c0_i32_0 = arith.constant 0 : i32
    return %arg0, %c0_i32 : i32, i32
  }
  func.func @transform_3(%arg0: i32, %arg1: i32) -> (i32, i32) {
    %c0_i32 = arith.constant 0 : i32
    %c0_i32_0 = arith.constant 0 : i32
    %c0_i32_1 = arith.constant 0 : i32
    return %c0_i32, %c0_i32_0 : i32, i32
  }
  func.func @transform_4(%arg0: i32, %arg1: i32) -> (i32, i32) {
    %c0_i32 = arith.constant 0 : i32
    %c0_i32_0 = arith.constant 0 : i32
    %c0_i32_1 = arith.constant 0 : i32
    return %c0_i32, %c0_i32_0 : i32, i32
  }
  func.func @transform_5(%arg0: i32, %arg1: i32) -> (i32, i32) {
    %c0_i32 = arith.constant 0 : i32
    %c0_i32_0 = arith.constant 0 : i32
    %c0_i32_1 = arith.constant 0 : i32
    return %c0_i32, %c0_i32_0 : i32, i32
  }
  func.func @transform_6(%arg0: i32, %arg1: i32) -> (i32, i32) {
    %c0_i32 = arith.constant 0 : i32
    %c0_i32_0 = arith.constant 0 : i32
    %c0_i32_1 = arith.constant 0 : i32
    return %c0_i32, %c0_i32_0 : i32, i32
  }
  func.func @transform_7(%arg0: i32, %arg1: i32) -> (i32, i32) {
    %c0_i32 = arith.constant 0 : i32
    %c0_i32_0 = arith.constant 0 : i32
    %c0_i32_1 = arith.constant 0 : i32
    return %c0_i32, %c0_i32_0 : i32, i32
  }
  func.func @transform_8(%arg0: i32, %arg1: i32) -> (i32, i32) {
    %c0_i32 = arith.constant 0 : i32
    %c0_i32_0 = arith.constant 0 : i32
    %c0_i32_1 = arith.constant 0 : i32
    return %c0_i32, %c0_i32_0 : i32, i32
  }
  func.func @transform_9(%arg0: i32, %arg1: i32) -> (i32, i32) {
    %c0_i32 = arith.constant 0 : i32
    %c0_i32_0 = arith.constant 0 : i32
    return %arg0, %c0_i32 : i32, i32
  }
  func.func @transform_10(%arg0: i32, %arg1: i32) -> (i32, i32) {
    %c0_i32 = arith.constant 0 : i32
    %c0_i32_0 = arith.constant 0 : i32
    return %arg0, %c0_i32 : i32, i32
  }
}

</mosaic_0001>

<llo_original>
// kernel: tpu_custom_call.1
$region0: #{tpu_custom_call.1}
  #allocation0 [shape = 'u32[]', space=smem, size = 0x4, offset = 0x4, fixed_abs, tag = 'smem constant byte address 0x4 - core index']
  #allocation1 [shape = 'u32[144,128]{1,0:T(1,128)}', space=vmem, size = 0x12000, scoped, tag = 'internal scratch']
  #allocation2 [shape = 'f32[128,8]{1,0:T(8,128)}', space=vmem, size = 0x10000, scoped, tag = 'scratch operand']
  %s0 = inlined_call_operand.vmem [shape: bf16[128,128], index: 0, kind: input, shape index: {}]
  %s1 = inlined_call_operand.vmem [shape: bf16[128,8], index: 1, kind: input, shape index: {}]
  %s2 = inlined_call_operand.vmem [shape: bf16[128,8], index: 2, kind: input, shape index: {}]
  %s3 = inlined_call_operand.vmem [shape: bf16[8,32], index: 3, kind: input, shape index: {}]
  %s4 = inlined_call_operand.vmem [shape: bf16[8,32], index: 4, kind: input, shape index: {}]
  %s5 = inlined_call_operand.vmem [shape: f32[1,32], index: 5, kind: input, shape index: {}]
  %s6 = inlined_call_operand.vmem [shape: bf16[32,16], index: 6, kind: input, shape index: {}]
  %s7 = inlined_call_operand.vmem [shape: bf16[32,16], index: 7, kind: input, shape index: {}]
  %s8 = inlined_call_operand.vmem [shape: f32[1,16], index: 8, kind: input, shape index: {}]
  %s9 = inlined_call_operand.vmem [shape: bf16[128,16], index: 9, kind: output, shape index: {0}]
  %s10 = inlined_call_operand.vmem [shape: bf16[128,16], index: 10, kind: output, shape index: {1}]
  %11 = xla_tuple %s9, %s10
  %s12 = sld [smem:[#allocation0]]
  $region62: #{tpu_custom_call.1} parent=0
    _
  %s14 = ssub.s32 1, %s12
  %s15 = scalar_select 0, %s14, %s12
  // Predicated region
  $region2: #{tpu_custom_call.1} parent=0 // pred_check
    _
  $region3: #{tpu_custom_call.1} parent=0 // pred_check_branch
    %17 = sbr.rel (0) target = $region5
  $region4: #{tpu_custom_call.1} parent=0 // pred_region
    _
  $region5: #{tpu_custom_call.1} parent=0 // pred_fallthru
    _
  // Predicated region
  $region6: #{tpu_custom_call.1} parent=0 // pred_check
    _
  $region7: #{tpu_custom_call.1} parent=0 // pred_check_branch
    %19 = sbr.rel (0) target = $region9
  $region8: #{tpu_custom_call.1} parent=0 // pred_region
    _
  $region9: #{tpu_custom_call.1} parent=0 // pred_fallthru
    _
  // Predicated region
  $region10: #{tpu_custom_call.1} parent=0 // pred_check
    _
  $region11: #{tpu_custom_call.1} parent=0 // pred_check_branch
    %21 = sbr.rel (0) target = $region13
  $region12: #{tpu_custom_call.1} parent=0 // pred_region
    _
  $region13: #{tpu_custom_call.1} parent=0 // pred_fallthru
    _
  // Predicated region
  $region14: #{tpu_custom_call.1} parent=0 // pred_check
    _
  $region15: #{tpu_custom_call.1} parent=0 // pred_check_branch
    %23 = sbr.rel (0) target = $region17
  $region16: #{tpu_custom_call.1} parent=0 // pred_region
    _
  $region17: #{tpu_custom_call.1} parent=0 // pred_fallthru
    _
  // Predicated region
  $region18: #{tpu_custom_call.1} parent=0 // pred_check
    _
  $region19: #{tpu_custom_call.1} parent=0 // pred_check_branch
    %25 = sbr.rel (0) target = $region21
  $region20: #{tpu_custom_call.1} parent=0 // pred_region
    _
  $region21: #{tpu_custom_call.1} parent=0 // pred_fallthru
    _
  // Predicated region
  $region22: #{tpu_custom_call.1} parent=0 // pred_check
    _
  $region23: #{tpu_custom_call.1} parent=0 // pred_check_branch
    %27 = sbr.rel (0) target = $region25
  $region24: #{tpu_custom_call.1} parent=0 // pred_region
    _
  $region25: #{tpu_custom_call.1} parent=0 // pred_fallthru
    _
  // Predicated region
  $region26: #{tpu_custom_call.1} parent=0 // pred_check
    _
  $region27: #{tpu_custom_call.1} parent=0 // pred_check_branch
    %29 = sbr.rel (0) target = $region29
  $region28: #{tpu_custom_call.1} parent=0 // pred_region
    _
  $region29: #{tpu_custom_call.1} parent=0 // pred_fallthru
    _
  // Predicated region
  $region30: #{tpu_custom_call.1} parent=0 // pred_check
    _
  $region31: #{tpu_custom_call.1} parent=0 // pred_check_branch
    %31 = sbr.rel (0) target = $region33
  $region32: #{tpu_custom_call.1} parent=0 // pred_region
    _
  $region33: #{tpu_custom_call.1} parent=0 // pred_fallthru
    _
  // Predicated region
  $region34: #{tpu_custom_call.1} parent=0 // pred_check
    _
  $region35: #{tpu_custom_call.1} parent=0 // pred_check_branch
    %33 = sbr.rel (0) target = $region37
  $region36: #{tpu_custom_call.1} parent=0 // pred_region
    _
  $region37: #{tpu_custom_call.1} parent=0 // pred_fallthru
    _
  %p35 = scmp.eq.s32.totalorder 0, 0
  // Predicated region
  $region38: #{tpu_custom_call.1} parent=0 // pred_check
    %p36 = pneg %p35
  $region39: #{tpu_custom_call.1} parent=0 // pred_check_branch
    %38 = sbr.rel (%p36) target = $region41
  $region40: #{tpu_custom_call.1} parent=0 // pred_region
    %vm39 = vcmask 64512
    %40 = vst.msk [vmem:[#allocation2] sm:$0xff] %vm39, 0.0
    %41 = vst.msk [vmem:[#allocation2 + $0x8] sm:$0xff] %vm39, 0.0
    %42 = vst.msk [vmem:[#allocation2 + $0x10] sm:$0xff] %vm39, 0.0
    %43 = vst.msk [vmem:[#allocation2 + $0x18] sm:$0xff] %vm39, 0.0
    %44 = vst.msk [vmem:[#allocation2 + $0x20] sm:$0xff] %vm39, 0.0
    %45 = vst.msk [vmem:[#allocation2 + $0x28] sm:$0xff] %vm39, 0.0
    %46 = vst.msk [vmem:[#allocation2 + $0x30] sm:$0xff] %vm39, 0.0
    %47 = vst.msk [vmem:[#allocation2 + $0x38] sm:$0xff] %vm39, 0.0
    %48 = vst.msk [vmem:[#allocation2 + $0x40] sm:$0xff] %vm39, 0.0
    %49 = vst.msk [vmem:[#allocation2 + $0x48] sm:$0xff] %vm39, 0.0
    %50 = vst.msk [vmem:[#allocation2 + $0x50] sm:$0xff] %vm39, 0.0
    %51 = vst.msk [vmem:[#allocation2 + $0x58] sm:$0xff] %vm39, 0.0
    %52 = vst.msk [vmem:[#allocation2 + $0x60] sm:$0xff] %vm39, 0.0
    %53 = vst.msk [vmem:[#allocation2 + $0x68] sm:$0xff] %vm39, 0.0
    %54 = vst.msk [vmem:[#allocation2 + $0x70] sm:$0xff] %vm39, 0.0
    %55 = vst.msk [vmem:[#allocation2 + $0x78] sm:$0xff] %vm39, 0.0
  $region41: #{tpu_custom_call.1} parent=0 // pred_fallthru
    _
  %v56 = vld [vmem:[#allocation2] sm:$0xff]
  %v57 = vld [vmem:[#allocation2 + $0x8] sm:$0xff]
  %v58 = vld [vmem:[#allocation2 + $0x10] sm:$0xff]
  %v59 = vld [vmem:[#allocation2 + $0x18] sm:$0xff]
  %v60 = vld [vmem:[#allocation2 + $0x20] sm:$0xff]
  %v61 = vld [vmem:[#allocation2 + $0x28] sm:$0xff]
  %v62 = vld [vmem:[#allocation2 + $0x30] sm:$0xff]
  %v63 = vld [vmem:[#allocation2 + $0x38] sm:$0xff]
  %v64 = vld [vmem:[#allocation2 + $0x40] sm:$0xff]
  %v65 = vld [vmem:[#allocation2 + $0x48] sm:$0xff]
  %v66 = vld [vmem:[#allocation2 + $0x50] sm:$0xff]
  %v67 = vld [vmem:[#allocation2 + $0x58] sm:$0xff]
  %v68 = vld [vmem:[#allocation2 + $0x60] sm:$0xff]
  %v69 = vld [vmem:[#allocation2 + $0x68] sm:$0xff]
  %v70 = vld [vmem:[#allocation2 + $0x70] sm:$0xff]
  %v71 = vld [vmem:[#allocation2 + $0x78] sm:$0xff]
  %v72 = vld [vmem:[%s0] sm:$0xf]
  %v73 = vld [vmem:[%s0 + $0x4] sm:$0xf]
  %v74 = vld [vmem:[%s0 + $0x8] sm:$0xf]
  %v75 = vld [vmem:[%s0 + $0xc] sm:$0xf]
  %v76 = vld [vmem:[%s0 + $0x10] sm:$0xf]
  %v77 = vld [vmem:[%s0 + $0x14] sm:$0xf]
  %v78 = vld [vmem:[%s0 + $0x18] sm:$0xf]
  %v79 = vld [vmem:[%s0 + $0x1c] sm:$0xf]
  %v80 = vld [vmem:[%s0 + $0x20] sm:$0xf]
  %v81 = vld [vmem:[%s0 + $0x24] sm:$0xf]
  %v82 = vld [vmem:[%s0 + $0x28] sm:$0xf]
  %v83 = vld [vmem:[%s0 + $0x2c] sm:$0xf]
  %v84 = vld [vmem:[%s0 + $0x30] sm:$0xf]
  %v85 = vld [vmem:[%s0 + $0x34] sm:$0xf]
  %v86 = vld [vmem:[%s0 + $0x38] sm:$0xf]
  %v87 = vld [vmem:[%s0 + $0x3c] sm:$0xf]
  %v88 = vld [vmem:[%s1] sm:$0xf]
  %v89 = vld [vmem:[%s1 + $0x4] sm:$0xf]
  %v90 = vld [vmem:[%s1 + $0x8] sm:$0xf]
  %v91 = vld [vmem:[%s1 + $0xc] sm:$0xf]
  %v92 = vld [vmem:[%s1 + $0x10] sm:$0xf]
  %v93 = vld [vmem:[%s1 + $0x14] sm:$0xf]
  %v94 = vld [vmem:[%s1 + $0x18] sm:$0xf]
  %v95 = vld [vmem:[%s1 + $0x1c] sm:$0xf]
  %v96 = vld [vmem:[%s1 + $0x20] sm:$0xf]
  %v97 = vld [vmem:[%s1 + $0x24] sm:$0xf]
  %v98 = vld [vmem:[%s1 + $0x28] sm:$0xf]
  %v99 = vld [vmem:[%s1 + $0x2c] sm:$0xf]
  %v100 = vld [vmem:[%s1 + $0x30] sm:$0xf]
  %v101 = vld [vmem:[%s1 + $0x34] sm:$0xf]
  %v102 = vld [vmem:[%s1 + $0x38] sm:$0xf]
  %v103 = vld [vmem:[%s1 + $0x3c] sm:$0xf]
  %v120 = vunpack.c.l.b16 %v72
  %v121 = vunpack.c.l.b16 %v73
  %v122 = vunpack.c.l.b16 %v74
  %v123 = vunpack.c.l.b16 %v75
  %v124 = vunpack.c.l.b16 %v76
  %v125 = vunpack.c.l.b16 %v77
  %v126 = vunpack.c.l.b16 %v78
  %v127 = vunpack.c.l.b16 %v79
  %v128 = vunpack.c.l.b16 %v80
  %v129 = vunpack.c.l.b16 %v81
  %v130 = vunpack.c.l.b16 %v82
  %v131 = vunpack.c.l.b16 %v83
  %v132 = vunpack.c.l.b16 %v84
  %v133 = vunpack.c.l.b16 %v85
  %v134 = vunpack.c.l.b16 %v86
  %v135 = vunpack.c.l.b16 %v87
  %v136 = vpack.c.b16 %v121, %v120
  %v137 = vpack.c.b16 %v123, %v122
  %v138 = vpack.c.b16 %v125, %v124
  %v139 = vpack.c.b16 %v127, %v126
  %v140 = vpack.c.b16 %v129, %v128
  %v141 = vpack.c.b16 %v131, %v130
  %v142 = vpack.c.b16 %v133, %v132
  %v143 = vpack.c.b16 %v135, %v134
  %v168 = vunpack.c.l.b16 %v88
  %v169 = vunpack.c.l.b16 %v89
  %v170 = vunpack.c.l.b16 %v90
  %v171 = vunpack.c.l.b16 %v91
  %v172 = vunpack.c.l.b16 %v92
  %v173 = vunpack.c.l.b16 %v93
  %v174 = vunpack.c.l.b16 %v94
  %v175 = vunpack.c.l.b16 %v95
  %v176 = vunpack.c.l.b16 %v96
  %v177 = vunpack.c.l.b16 %v97
  %v178 = vunpack.c.l.b16 %v98
  %v179 = vunpack.c.l.b16 %v99
  %v180 = vunpack.c.l.b16 %v100
  %v181 = vunpack.c.l.b16 %v101
  %v182 = vunpack.c.l.b16 %v102
  %v183 = vunpack.c.l.b16 %v103
  %v184 = vpack.c.b16 %v169, %v168
  %v185 = vpack.c.b16 %v171, %v170
  %v186 = vpack.c.b16 %v173, %v172
  %v187 = vpack.c.b16 %v175, %v174
  %v188 = vpack.c.b16 %v177, %v176
  %v189 = vpack.c.b16 %v179, %v178
  %v190 = vpack.c.b16 %v181, %v180
  %v191 = vpack.c.b16 %v183, %v182
  %200 = vmatprep.subr.bf16.mxu0 0
  %201 = vmatpush1.bf16.msra.mxu0 %v184
  %202 = vmatprep.subr.bf16.mxu0 0
  %203 = vmatpush1.bf16.msra.mxu0 %v185
  %204 = vmatprep.subr.bf16.mxu0 0
  %205 = vmatpush1.bf16.msra.mxu0 %v186
  %206 = vmatprep.subr.bf16.mxu0 0
  %207 = vmatpush1.bf16.msra.mxu0 %v187
  %208 = vmatprep.subr.bf16.mxu0 0
  %209 = vmatpush1.bf16.msra.mxu0 %v188
  %210 = vmatprep.subr.bf16.mxu0 0
  %211 = vmatpush1.bf16.msra.mxu0 %v189
  %212 = vmatprep.subr.bf16.mxu0 0
  %213 = vmatpush1.bf16.msra.mxu0 %v190
  %214 = vmatprep.subr.bf16.mxu0 0
  %215 = vmatpush1.bf16.msra.mxu0 %v191
  %216 = vmatprep.subr.bf16.mxu0 0
  %217 = vmatpush1.bf16.msra.mxu0 0
  %218 = vmatprep.subr.bf16.mxu0 0
  %219 = vmatpush1.bf16.msra.mxu0 0
  %220 = vmatprep.subr.bf16.mxu0 0
  %221 = vmatpush1.bf16.msra.mxu0 0
  %222 = vmatprep.subr.bf16.mxu0 0
  %223 = vmatpush1.bf16.msra.mxu0 0
  %224 = vmatprep.subr.bf16.mxu0 0
  %225 = vmatpush1.bf16.msra.mxu0 0
  %226 = vmatprep.subr.bf16.mxu0 0
  %227 = vmatpush1.bf16.msra.mxu0 0
  %228 = vmatprep.subr.bf16.mxu0 0
  %229 = vmatpush1.bf16.msra.mxu0 0
  %230 = vmatprep.subr.bf16.mxu0 0
  %231 = vmatpush1.bf16.msra.mxu0 0
  %232 = vmatprep.mubr.bf16.mxu0 0
  %233 = vmatmul.mubr.bf16.gmra.mrb[0].mxu0 %v136
  %v234 = vpop.f32.mrb[0].mxu0
  %v235 = vadd.f32 0.0, %v234
  %v236 = vpop.f32.mrb[0].mxu0
  %v237 = vpop.f32.mrb[0].mxu0
  %v238 = vadd.f32 0.0, %v237
  %v239 = vpop.f32.mrb[0].mxu0
  %240 = vmatprep.mubr.bf16.mxu0 0
  %241 = vmatmul.mubr.bf16.gmra.mrb[0].mxu0 %v137
  %v242 = vpop.f32.mrb[0].mxu0
  %v243 = vadd.f32 0.0, %v242
  %v244 = vpop.f32.mrb[0].mxu0
  %v245 = vpop.f32.mrb[0].mxu0
  %v246 = vadd.f32 0.0, %v245
  %v247 = vpop.f32.mrb[0].mxu0
  %248 = vmatprep.mubr.bf16.mxu0 0
  %249 = vmatmul.mubr.bf16.gmra.mrb[0].mxu0 %v138
  %v250 = vpop.f32.mrb[0].mxu0
  %v251 = vadd.f32 0.0, %v250
  %v252 = vpop.f32.mrb[0].mxu0
  %v253 = vpop.f32.mrb[0].mxu0
  %v254 = vadd.f32 0.0, %v253
  %v255 = vpop.f32.mrb[0].mxu0
  %256 = vmatprep.mubr.bf16.mxu0 0
  %257 = vmatmul.mubr.bf16.gmra.mrb[0].mxu0 %v139
  %v258 = vpop.f32.mrb[0].mxu0
  %v259 = vadd.f32 0.0, %v258
  %v260 = vpop.f32.mrb[0].mxu0
  %v261 = vpop.f32.mrb[0].mxu0
  %v262 = vadd.f32 0.0, %v261
  %v263 = vpop.f32.mrb[0].mxu0
  %264 = vmatprep.mubr.bf16.mxu0 0
  %265 = vmatmul.mubr.bf16.gmra.mrb[0].mxu0 %v140
  %v266 = vpop.f32.mrb[0].mxu0
  %v267 = vadd.f32 0.0, %v266
  %v268 = vpop.f32.mrb[0].mxu0
  %v269 = vpop.f32.mrb[0].mxu0
  %v270 = vadd.f32 0.0, %v269
  %v271 = vpop.f32.mrb[0].mxu0
  %272 = vmatprep.mubr.bf16.mxu0 0
  %273 = vmatmul.mubr.bf16.gmra.mrb[0].mxu0 %v141
  %v274 = vpop.f32.mrb[0].mxu0
  %v275 = vadd.f32 0.0, %v274
  %v276 = vpop.f32.mrb[0].mxu0
  %v277 = vpop.f32.mrb[0].mxu0
  %v278 = vadd.f32 0.0, %v277
  %v279 = vpop.f32.mrb[0].mxu0
  %280 = vmatprep.mubr.bf16.mxu0 0
  %281 = vmatmul.mubr.bf16.gmra.mrb[0].mxu0 %v142
  %v282 = vpop.f32.mrb[0].mxu0
  %v283 = vadd.f32 0.0, %v282
  %v284 = vpop.f32.mrb[0].mxu0
  %v285 = vpop.f32.mrb[0].mxu0
  %v286 = vadd.f32 0.0, %v285
  %v287 = vpop.f32.mrb[0].mxu0
  %288 = vmatprep.mubr.bf16.mxu0 0
  %289 = vmatmul.mubr.bf16.gmra.mrb[0].mxu0 %v143
  %v290 = vpop.f32.mrb[0].mxu0
  %v291 = vadd.f32 0.0, %v290
  %v292 = vpop.f32.mrb[0].mxu0
  %v293 = vpop.f32.mrb[0].mxu0
  %v294 = vadd.f32 0.0, %v293
  %v295 = vpop.f32.mrb[0].mxu0
  %296 = vdwg.mxu0
  %v297 = vadd.f32 %v56, %v235
  %v298 = vadd.f32 %v57, %v238
  %v299 = vadd.f32 %v58, %v243
  %v300 = vadd.f32 %v59, %v246
  %v301 = vadd.f32 %v60, %v251
  %v302 = vadd.f32 %v61, %v254
  %v303 = vadd.f32 %v62, %v259
  %v304 = vadd.f32 %v63, %v262
  %v305 = vadd.f32 %v64, %v267
  %v306 = vadd.f32 %v65, %v270
  %v307 = vadd.f32 %v66, %v275
  %v308 = vadd.f32 %v67, %v278
  %v309 = vadd.f32 %v68, %v283
  %v310 = vadd.f32 %v69, %v286
  %v311 = vadd.f32 %v70, %v291
  %v312 = vadd.f32 %v71, %v294
  %vm313 = vcmask 64512
  %314 = vst.msk [vmem:[#allocation2] sm:$0xff] %vm313, %v297
  %315 = vst.msk [vmem:[#allocation2 + $0x8] sm:$0xff] %vm313, %v298
  %316 = vst.msk [vmem:[#allocation2 + $0x10] sm:$0xff] %vm313, %v299
  %317 = vst.msk [vmem:[#allocation2 + $0x18] sm:$0xff] %vm313, %v300
  %318 = vst.msk [vmem:[#allocation2 + $0x20] sm:$0xff] %vm313, %v301
  %319 = vst.msk [vmem:[#allocation2 + $0x28] sm:$0xff] %vm313, %v302
  %320 = vst.msk [vmem:[#allocation2 + $0x30] sm:$0xff] %vm313, %v303
  %321 = vst.msk [vmem:[#allocation2 + $0x38] sm:$0xff] %vm313, %v304
  %322 = vst.msk [vmem:[#allocation2 + $0x40] sm:$0xff] %vm313, %v305
  %323 = vst.msk [vmem:[#allocation2 + $0x48] sm:$0xff] %vm313, %v306
  %324 = vst.msk [vmem:[#allocation2 + $0x50] sm:$0xff] %vm313, %v307
  %325 = vst.msk [vmem:[#allocation2 + $0x58] sm:$0xff] %vm313, %v308
  %326 = vst.msk [vmem:[#allocation2 + $0x60] sm:$0xff] %vm313, %v309
  %327 = vst.msk [vmem:[#allocation2 + $0x68] sm:$0xff] %vm313, %v310
  %328 = vst.msk [vmem:[#allocation2 + $0x70] sm:$0xff] %vm313, %v311
  %329 = vst.msk [vmem:[#allocation2 + $0x78] sm:$0xff] %vm313, %v312
  // Predicated region
  $region42: #{tpu_custom_call.1} parent=0 // pred_check
    %p330 = pneg %p35
  $region43: #{tpu_custom_call.1} parent=0 // pred_check_branch
    %332 = sbr.rel (%p330) target = $region45
  $region44: #{tpu_custom_call.1} parent=0 // pred_region
    %v333 = vld [vmem:[#allocation2] sm:$0xff]
    %v334 = vld [vmem:[#allocation2 + $0x8] sm:$0xff]
    %v335 = vld [vmem:[#allocation2 + $0x10] sm:$0xff]
    %v336 = vld [vmem:[#allocation2 + $0x18] sm:$0xff]
    %v337 = vld [vmem:[#allocation2 + $0x20] sm:$0xff]
    %v338 = vld [vmem:[#allocation2 + $0x28] sm:$0xff]
    %v339 = vld [vmem:[#allocation2 + $0x30] sm:$0xff]
    %v340 = vld [vmem:[#allocation2 + $0x38] sm:$0xff]
    %v341 = vld [vmem:[#allocation2 + $0x40] sm:$0xff]
    %v342 = vld [vmem:[#allocation2 + $0x48] sm:$0xff]
    %v343 = vld [vmem:[#allocation2 + $0x50] sm:$0xff]
    %v344 = vld [vmem:[#allocation2 + $0x58] sm:$0xff]
    %v345 = vld [vmem:[#allocation2 + $0x60] sm:$0xff]
    %v346 = vld [vmem:[#allocation2 + $0x68] sm:$0xff]
    %v347 = vld [vmem:[#allocation2 + $0x70] sm:$0xff]
    %v348 = vld [vmem:[#allocation2 + $0x78] sm:$0xff]
    %v349 = vpack.c.bf16 %v334, %v333
    %v350 = vpack.c.bf16 %v336, %v335
    %v351 = vpack.c.bf16 %v338, %v337
    %v352 = vpack.c.bf16 %v340, %v339
    %v353 = vpack.c.bf16 %v342, %v341
    %v354 = vpack.c.bf16 %v344, %v343
    %v355 = vpack.c.bf16 %v346, %v345
    %v356 = vpack.c.bf16 %v348, %v347
    %v357 = vld [vmem:[%s3] sm:$0xf]
    %v358 = vld [vmem:[%s5] sm:$0x1]
    %v360 = vlaneseq
    %v361 = vshrl.u32 %v360, 7
    %v362 = vsub.s32 0, %v361
    %v363 = vrot.slane %v358, %v362
    %v366 = vsel %vm313, %v349, 0
    %v369 = vsel %vm313, %v350, 0
    %v372 = vsel %vm313, %v351, 0
    %v375 = vsel %vm313, %v352, 0
    %v378 = vsel %vm313, %v353, 0
    %v381 = vsel %vm313, %v354, 0
    %v384 = vsel %vm313, %v355, 0
    %v387 = vsel %vm313, %v356, 0
    %vm389 = vcmask 1043456
    %v391 = vsel %vm389, %v357, 0
    %393 = vmatprep.subr.bf16.mxu0 0
    %394 = vmatpush1.bf16.msra.mxu0 %v391
    %395 = vmatprep.subr.bf16.mxu0 0
    %396 = vmatpush1.bf16.msra.mxu0 0
    %397 = vmatprep.subr.bf16.mxu0 0
    %398 = vmatpush1.bf16.msra.mxu0 0
    %399 = vmatprep.subr.bf16.mxu0 0
    %400 = vmatpush1.bf16.msra.mxu0 0
    %401 = vmatprep.subr.bf16.mxu0 0
    %402 = vmatpush1.bf16.msra.mxu0 0
    %403 = vmatprep.subr.bf16.mxu0 0
    %404 = vmatpush1.bf16.msra.mxu0 0
    %405 = vmatprep.subr.bf16.mxu0 0
    %406 = vmatpush1.bf16.msra.mxu0 0
    %407 = vmatprep.subr.bf16.mxu0 0
    %408 = vmatpush1.bf16.msra.mxu0 0
    %409 = vmatprep.subr.bf16.mxu0 0
    %410 = vmatpush1.bf16.msra.mxu0 0
    %411 = vmatprep.subr.bf16.mxu0 0
    %412 = vmatpush1.bf16.msra.mxu0 0
    %413 = vmatprep.subr.bf16.mxu0 0
    %414 = vmatpush1.bf16.msra.mxu0 0
    %415 = vmatprep.subr.bf16.mxu0 0
    %416 = vmatpush1.bf16.msra.mxu0 0
    %417 = vmatprep.subr.bf16.mxu0 0
    %418 = vmatpush1.bf16.msra.mxu0 0
    %419 = vmatprep.subr.bf16.mxu0 0
    %420 = vmatpush1.bf16.msra.mxu0 0
    %421 = vmatprep.subr.bf16.mxu0 0
    %422 = vmatpush1.bf16.msra.mxu0 0
    %423 = vmatprep.subr.bf16.mxu0 0
    %424 = vmatpush1.bf16.msra.mxu0 0
    %425 = vmatprep.mubr.bf16.mxu0 0
    %426 = vmatmul.mubr.bf16.gmra.mrb[0].mxu0 %v366
    %v427 = vpop.f32.mrb[0].mxu0
    %v428 = vadd.f32 %v363, %v427
    %v429 = vpop.f32.mrb[0].mxu0
    %v430 = vpop.f32.mrb[0].mxu0
    %v431 = vadd.f32 %v363, %v430
    %v432 = vpop.f32.mrb[0].mxu0
    %433 = vmatprep.mubr.bf16.mxu0 0
    %434 = vmatmul.mubr.bf16.gmra.mrb[0].mxu0 %v369
    %v435 = vpop.f32.mrb[0].mxu0
    %v436 = vadd.f32 %v363, %v435
    %v437 = vpop.f32.mrb[0].mxu0
    %v438 = vpop.f32.mrb[0].mxu0
    %v439 = vadd.f32 %v363, %v438
    %v440 = vpop.f32.mrb[0].mxu0
    %441 = vmatprep.mubr.bf16.mxu0 0
    %442 = vmatmul.mubr.bf16.gmra.mrb[0].mxu0 %v372
    %v443 = vpop.f32.mrb[0].mxu0
    %v444 = vadd.f32 %v363, %v443
    %v445 = vpop.f32.mrb[0].mxu0
    %v446 = vpop.f32.mrb[0].mxu0
    %v447 = vadd.f32 %v363, %v446
    %v448 = vpop.f32.mrb[0].mxu0
    %449 = vmatprep.mubr.bf16.mxu0 0
    %450 = vmatmul.mubr.bf16.gmra.mrb[0].mxu0 %v375
    %v451 = vpop.f32.mrb[0].mxu0
    %v452 = vadd.f32 %v363, %v451
    %v453 = vpop.f32.mrb[0].mxu0
    %v454 = vpop.f32.mrb[0].mxu0
    %v455 = vadd.f32 %v363, %v454
    %v456 = vpop.f32.mrb[0].mxu0
    %457 = vmatprep.mubr.bf16.mxu0 0
    %458 = vmatmul.mubr.bf16.gmra.mrb[0].mxu0 %v378
    %v459 = vpop.f32.mrb[0].mxu0
    %v460 = vadd.f32 %v363, %v459
    %v461 = vpop.f32.mrb[0].mxu0
    %v462 = vpop.f32.mrb[0].mxu0
    %v463 = vadd.f32 %v363, %v462
    %v464 = vpop.f32.mrb[0].mxu0
    %465 = vmatprep.mubr.bf16.mxu0 0
    %466 = vmatmul.mubr.bf16.gmra.mrb[0].mxu0 %v381
    %v467 = vpop.f32.mrb[0].mxu0
    %v468 = vadd.f32 %v363, %v467
    %v469 = vpop.f32.mrb[0].mxu0
    %v470 = vpop.f32.mrb[0].mxu0
    %v471 = vadd.f32 %v363, %v470
    %v472 = vpop.f32.mrb[0].mxu0
    %473 = vmatprep.mubr.bf16.mxu0 0
    %474 = vmatmul.mubr.bf16.gmra.mrb[0].mxu0 %v384
    %v475 = vpop.f32.mrb[0].mxu0
    %v476 = vadd.f32 %v363, %v475
    %v477 = vpop.f32.mrb[0].mxu0
    %v478 = vpop.f32.mrb[0].mxu0
    %v479 = vadd.f32 %v363, %v478
    %v480 = vpop.f32.mrb[0].mxu0
    %481 = vmatprep.mubr.bf16.mxu0 0
    %482 = vmatmul.mubr.bf16.gmra.mrb[0].mxu0 %v387
    %v483 = vpop.f32.mrb[0].mxu0
    %v484 = vadd.f32 %v363, %v483
    %v485 = vpop.f32.mrb[0].mxu0
    %v486 = vpop.f32.mrb[0].mxu0
    %v487 = vadd.f32 %v363, %v486
    %v488 = vpop.f32.mrb[0].mxu0
    %489 = vdwg.mxu0
    %v490 = vld [vmem:[%s2] sm:$0xf]
    %v491 = vld [vmem:[%s2 + $0x4] sm:$0xf]
    %v492 = vld [vmem:[%s2 + $0x8] sm:$0xf]
    %v493 = vld [vmem:[%s2 + $0xc] sm:$0xf]
    %v494 = vld [vmem:[%s2 + $0x10] sm:$0xf]
    %v495 = vld [vmem:[%s2 + $0x14] sm:$0xf]
    %v496 = vld [vmem:[%s2 + $0x18] sm:$0xf]
    %v497 = vld [vmem:[%s2 + $0x1c] sm:$0xf]
    %v498 = vld [vmem:[%s2 + $0x20] sm:$0xf]
    %v499 = vld [vmem:[%s2 + $0x24] sm:$0xf]
    %v500 = vld [vmem:[%s2 + $0x28] sm:$0xf]
    %v501 = vld [vmem:[%s2 + $0x2c] sm:$0xf]
    %v502 = vld [vmem:[%s2 + $0x30] sm:$0xf]
    %v503 = vld [vmem:[%s2 + $0x34] sm:$0xf]
    %v504 = vld [vmem:[%s2 + $0x38] sm:$0xf]
    %v505 = vld [vmem:[%s2 + $0x3c] sm:$0xf]
    %v506 = vld [vmem:[%s4] sm:$0xf]
    %v523 = vunpack.c.l.b16 %v490
    %v524 = vunpack.c.l.b16 %v491
    %v525 = vunpack.c.l.b16 %v492
    %v526 = vunpack.c.l.b16 %v493
    %v527 = vunpack.c.l.b16 %v494
    %v528 = vunpack.c.l.b16 %v495
    %v529 = vunpack.c.l.b16 %v496
    %v530 = vunpack.c.l.b16 %v497
    %v531 = vunpack.c.l.b16 %v498
    %v532 = vunpack.c.l.b16 %v499
    %v533 = vunpack.c.l.b16 %v500
    %v534 = vunpack.c.l.b16 %v501
    %v535 = vunpack.c.l.b16 %v502
    %v536 = vunpack.c.l.b16 %v503
    %v537 = vunpack.c.l.b16 %v504
    %v538 = vunpack.c.l.b16 %v505
    %v539 = vpack.c.b16 %v524, %v523
    %v540 = vpack.c.b16 %v526, %v525
    %v541 = vpack.c.b16 %v528, %v527
    %v542 = vpack.c.b16 %v530, %v529
    %v543 = vpack.c.b16 %v532, %v531
    %v544 = vpack.c.b16 %v534, %v533
    %v545 = vpack.c.b16 %v536, %v535
    %v546 = vpack.c.b16 %v538, %v537
    %v548 = vsel %vm313, %v539, 0
    %v551 = vsel %vm313, %v540, 0
    %v554 = vsel %vm313, %v541, 0
    %v557 = vsel %vm313, %v542, 0
    %v560 = vsel %vm313, %v543, 0
    %v563 = vsel %vm313, %v544, 0
    %v566 = vsel %vm313, %v545, 0
    %v569 = vsel %vm313, %v546, 0
    %v572 = vsel %vm389, %v506, 0
    %574 = vmatprep.subr.bf16.mxu0 0
    %575 = vmatpush1.bf16.msra.mxu0 %v572
    %576 = vmatprep.subr.bf16.mxu0 0
    %577 = vmatpush1.bf16.msra.mxu0 0
    %578 = vmatprep.subr.bf16.mxu0 0
    %579 = vmatpush1.bf16.msra.mxu0 0
    %580 = vmatprep.subr.bf16.mxu0 0
    %581 = vmatpush1.bf16.msra.mxu0 0
    %582 = vmatprep.subr.bf16.mxu0 0
    %583 = vmatpush1.bf16.msra.mxu0 0
    %584 = vmatprep.subr.bf16.mxu0 0
    %585 = vmatpush1.bf16.msra.mxu0 0
    %586 = vmatprep.subr.bf16.mxu0 0
    %587 = vmatpush1.bf16.msra.mxu0 0
    %588 = vmatprep.subr.bf16.mxu0 0
    %589 = vmatpush1.bf16.msra.mxu0 0
    %590 = vmatprep.subr.bf16.mxu0 0
    %591 = vmatpush1.bf16.msra.mxu0 0
    %592 = vmatprep.subr.bf16.mxu0 0
    %593 = vmatpush1.bf16.msra.mxu0 0
    %594 = vmatprep.subr.bf16.mxu0 0
    %595 = vmatpush1.bf16.msra.mxu0 0
    %596 = vmatprep.subr.bf16.mxu0 0
    %597 = vmatpush1.bf16.msra.mxu0 0
    %598 = vmatprep.subr.bf16.mxu0 0
    %599 = vmatpush1.bf16.msra.mxu0 0
    %600 = vmatprep.subr.bf16.mxu0 0
    %601 = vmatpush1.bf16.msra.mxu0 0
    %602 = vmatprep.subr.bf16.mxu0 0
    %603 = vmatpush1.bf16.msra.mxu0 0
    %604 = vmatprep.subr.bf16.mxu0 0
    %605 = vmatpush1.bf16.msra.mxu0 0
    %606 = vmatprep.mubr.bf16.mxu0 0
    %607 = vmatmul.mubr.bf16.gmra.mrb[0].mxu0 %v548
    %v608 = vpop.f32.mrb[0].mxu0
    %v609 = vadd.f32 0.0, %v608
    %v610 = vpop.f32.mrb[0].mxu0
    %v611 = vpop.f32.mrb[0].mxu0
    %v612 = vadd.f32 0.0, %v611
    %v613 = vpop.f32.mrb[0].mxu0
    %614 = vmatprep.mubr.bf16.mxu0 0
    %615 = vmatmul.mubr.bf16.gmra.mrb[0].mxu0 %v551
    %v616 = vpop.f32.mrb[0].mxu0
    %v617 = vadd.f32 0.0, %v616
    %v618 = vpop.f32.mrb[0].mxu0
    %v619 = vpop.f32.mrb[0].mxu0
    %v620 = vadd.f32 0.0, %v619
    %v621 = vpop.f32.mrb[0].mxu0
    %622 = vmatprep.mubr.bf16.mxu0 0
    %623 = vmatmul.mubr.bf16.gmra.mrb[0].mxu0 %v554
    %v624 = vpop.f32.mrb[0].mxu0
    %v625 = vadd.f32 0.0, %v624
    %v626 = vpop.f32.mrb[0].mxu0
    %v627 = vpop.f32.mrb[0].mxu0
    %v628 = vadd.f32 0.0, %v627
    %v629 = vpop.f32.mrb[0].mxu0
    %630 = vmatprep.mubr.bf16.mxu0 0
    %631 = vmatmul.mubr.bf16.gmra.mrb[0].mxu0 %v557
    %v632 = vpop.f32.mrb[0].mxu0
    %v633 = vadd.f32 0.0, %v632
    %v634 = vpop.f32.mrb[0].mxu0
    %v635 = vpop.f32.mrb[0].mxu0
    %v636 = vadd.f32 0.0, %v635
    %v637 = vpop.f32.mrb[0].mxu0
    %638 = vmatprep.mubr.bf16.mxu0 0
    %639 = vmatmul.mubr.bf16.gmra.mrb[0].mxu0 %v560
    %v640 = vpop.f32.mrb[0].mxu0
    %v641 = vadd.f32 0.0, %v640
    %v642 = vpop.f32.mrb[0].mxu0
    %v643 = vpop.f32.mrb[0].mxu0
    %v644 = vadd.f32 0.0, %v643
    %v645 = vpop.f32.mrb[0].mxu0
    %646 = vmatprep.mubr.bf16.mxu0 0
    %647 = vmatmul.mubr.bf16.gmra.mrb[0].mxu0 %v563
    %v648 = vpop.f32.mrb[0].mxu0
    %v649 = vadd.f32 0.0, %v648
    %v650 = vpop.f32.mrb[0].mxu0
    %v651 = vpop.f32.mrb[0].mxu0
    %v652 = vadd.f32 0.0, %v651
    %v653 = vpop.f32.mrb[0].mxu0
    %654 = vmatprep.mubr.bf16.mxu0 0
    %655 = vmatmul.mubr.bf16.gmra.mrb[0].mxu0 %v566
    %v656 = vpop.f32.mrb[0].mxu0
    %v657 = vadd.f32 0.0, %v656
    %v658 = vpop.f32.mrb[0].mxu0
    %v659 = vpop.f32.mrb[0].mxu0
    %v660 = vadd.f32 0.0, %v659
    %v661 = vpop.f32.mrb[0].mxu0
    %662 = vmatprep.mubr.bf16.mxu0 0
    %663 = vmatmul.mubr.bf16.gmra.mrb[0].mxu0 %v569
    %v664 = vpop.f32.mrb[0].mxu0
    %v665 = vadd.f32 0.0, %v664
    %v666 = vpop.f32.mrb[0].mxu0
    %v667 = vpop.f32.mrb[0].mxu0
    %v668 = vadd.f32 0.0, %v667
    %v669 = vpop.f32.mrb[0].mxu0
    %670 = vdwg.mxu0
    %v671 = vadd.f32 %v428, %v609
    %v672 = vadd.f32 %v431, %v612
    %v673 = vadd.f32 %v436, %v617
    %v674 = vadd.f32 %v439, %v620
    %v675 = vadd.f32 %v444, %v625
    %v676 = vadd.f32 %v447, %v628
    %v677 = vadd.f32 %v452, %v633
    %v678 = vadd.f32 %v455, %v636
    %v679 = vadd.f32 %v460, %v641
    %v680 = vadd.f32 %v463, %v644
    %v681 = vadd.f32 %v468, %v649
    %v682 = vadd.f32 %v471, %v652
    %v683 = vadd.f32 %v476, %v657
    %v684 = vadd.f32 %v479, %v660
    %v685 = vadd.f32 %v484, %v665
    %v686 = vadd.f32 %v487, %v668
    %v687 = vmax.f32 %v671, 0.0
    %v688 = vmax.f32 %v672, 0.0
    %v689 = vmax.f32 %v673, 0.0
    %v690 = vmax.f32 %v674, 0.0
    %v691 = vmax.f32 %v675, 0.0
    %v692 = vmax.f32 %v676, 0.0
    %v693 = vmax.f32 %v677, 0.0
    %v694 = vmax.f32 %v678, 0.0
    %v695 = vmax.f32 %v679, 0.0
    %v696 = vmax.f32 %v680, 0.0
    %v697 = vmax.f32 %v681, 0.0
    %v698 = vmax.f32 %v682, 0.0
    %v699 = vmax.f32 %v683, 0.0
    %v700 = vmax.f32 %v684, 0.0
    %v701 = vmax.f32 %v685, 0.0
    %v702 = vmax.f32 %v686, 0.0
    %v703 = vpack.c.bf16 %v688, %v687
    %v704 = vpack.c.bf16 %v690, %v689
    %v705 = vpack.c.bf16 %v692, %v691
    %v706 = vpack.c.bf16 %v694, %v693
    %v707 = vpack.c.bf16 %v696, %v695
    %v708 = vpack.c.bf16 %v698, %v697
    %v709 = vpack.c.bf16 %v700, %v699
    %v710 = vpack.c.bf16 %v702, %v701
    %v711 = vld [vmem:[%s6] sm:$0xf]
    %v712 = vld [vmem:[%s6 + $0x4] sm:$0xf]
    %v713 = vld [vmem:[%s6 + $0x8] sm:$0xf]
    %v714 = vld [vmem:[%s6 + $0xc] sm:$0xf]
    %v719 = vunpack.c.l.b16 %v711
    %v720 = vunpack.c.l.b16 %v712
    %v721 = vunpack.c.l.b16 %v713
    %v722 = vunpack.c.l.b16 %v714
    %v723 = vpack.c.b16 %v720, %v719
    %v724 = vpack.c.b16 %v722, %v721
    %vm727 = vcmask 261120
    %v729 = vsel %vm727, %v703, 0
    %v732 = vsel %vm727, %v704, 0
    %v735 = vsel %vm727, %v705, 0
    %v738 = vsel %vm727, %v706, 0
    %v741 = vsel %vm727, %v707, 0
    %v744 = vsel %vm727, %v708, 0
    %v747 = vsel %vm727, %v709, 0
    %v750 = vsel %vm727, %v710, 0
    %752 = vmatprep.subr.bf16.mxu0 0
    %753 = vmatpush1.bf16.msra.mxu0 %v723
    %754 = vmatprep.subr.bf16.mxu0 0
    %755 = vmatpush1.bf16.msra.mxu0 %v724
    %756 = vmatprep.subr.bf16.mxu0 0
    %757 = vmatpush1.bf16.msra.mxu0 0
    %758 = vmatprep.subr.bf16.mxu0 0
    %759 = vmatpush1.bf16.msra.mxu0 0
    %760 = vmatprep.subr.bf16.mxu0 0
    %761 = vmatpush1.bf16.msra.mxu0 0
    %762 = vmatprep.subr.bf16.mxu0 0
    %763 = vmatpush1.bf16.msra.mxu0 0
    %764 = vmatprep.subr.bf16.mxu0 0
    %765 = vmatpush1.bf16.msra.mxu0 0
    %766 = vmatprep.subr.bf16.mxu0 0
    %767 = vmatpush1.bf16.msra.mxu0 0
    %768 = vmatprep.subr.bf16.mxu0 0
    %769 = vmatpush1.bf16.msra.mxu0 0
    %770 = vmatprep.subr.bf16.mxu0 0
    %771 = vmatpush1.bf16.msra.mxu0 0
    %772 = vmatprep.subr.bf16.mxu0 0
    %773 = vmatpush1.bf16.msra.mxu0 0
    %774 = vmatprep.subr.bf16.mxu0 0
    %775 = vmatpush1.bf16.msra.mxu0 0
    %776 = vmatprep.subr.bf16.mxu0 0
    %777 = vmatpush1.bf16.msra.mxu0 0
    %778 = vmatprep.subr.bf16.mxu0 0
    %779 = vmatpush1.bf16.msra.mxu0 0
    %780 = vmatprep.subr.bf16.mxu0 0
    %781 = vmatpush1.bf16.msra.mxu0 0
    %782 = vmatprep.subr.bf16.mxu0 0
    %783 = vmatpush1.bf16.msra.mxu0 0
    %784 = vmatprep.mubr.bf16.mxu0 0
    %785 = vmatmul.mubr.bf16.gmra.mrb[0].mxu0 %v729
    %v786 = vpop.f32.mrb[0].mxu0
    %v787 = vadd.f32 0.0, %v786
    %v788 = vpop.f32.mrb[0].mxu0
    %v789 = vpop.f32.mrb[0].mxu0
    %v790 = vadd.f32 0.0, %v789
    %v791 = vpop.f32.mrb[0].mxu0
    %792 = vmatprep.mubr.bf16.mxu0 0
    %793 = vmatmul.mubr.bf16.gmra.mrb[0].mxu0 %v732
    %v794 = vpop.f32.mrb[0].mxu0
    %v795 = vadd.f32 0.0, %v794
    %v796 = vpop.f32.mrb[0].mxu0
    %v797 = vpop.f32.mrb[0].mxu0
    %v798 = vadd.f32 0.0, %v797
    %v799 = vpop.f32.mrb[0].mxu0
    %800 = vmatprep.mubr.bf16.mxu0 0
    %801 = vmatmul.mubr.bf16.gmra.mrb[0].mxu0 %v735
    %v802 = vpop.f32.mrb[0].mxu0
    %v803 = vadd.f32 0.0, %v802
    %v804 = vpop.f32.mrb[0].mxu0
    %v805 = vpop.f32.mrb[0].mxu0
    %v806 = vadd.f32 0.0, %v805
    %v807 = vpop.f32.mrb[0].mxu0
    %808 = vmatprep.mubr.bf16.mxu0 0
    %809 = vmatmul.mubr.bf16.gmra.mrb[0].mxu0 %v738
    %v810 = vpop.f32.mrb[0].mxu0
    %v811 = vadd.f32 0.0, %v810
    %v812 = vpop.f32.mrb[0].mxu0
    %v813 = vpop.f32.mrb[0].mxu0
    %v814 = vadd.f32 0.0, %v813
    %v815 = vpop.f32.mrb[0].mxu0
    %816 = vmatprep.mubr.bf16.mxu0 0
    %817 = vmatmul.mubr.bf16.gmra.mrb[0].mxu0 %v741
    %v818 = vpop.f32.mrb[0].mxu0
    %v819 = vadd.f32 0.0, %v818
    %v820 = vpop.f32.mrb[0].mxu0
    %v821 = vpop.f32.mrb[0].mxu0
    %v822 = vadd.f32 0.0, %v821
    %v823 = vpop.f32.mrb[0].mxu0
    %824 = vmatprep.mubr.bf16.mxu0 0
    %825 = vmatmul.mubr.bf16.gmra.mrb[0].mxu0 %v744
    %v826 = vpop.f32.mrb[0].mxu0
    %v827 = vadd.f32 0.0, %v826
    %v828 = vpop.f32.mrb[0].mxu0
    %v829 = vpop.f32.mrb[0].mxu0
    %v830 = vadd.f32 0.0, %v829
    %v831 = vpop.f32.mrb[0].mxu0
    %832 = vmatprep.mubr.bf16.mxu0 0
    %833 = vmatmul.mubr.bf16.gmra.mrb[0].mxu0 %v747
    %v834 = vpop.f32.mrb[0].mxu0
    %v835 = vadd.f32 0.0, %v834
    %v836 = vpop.f32.mrb[0].mxu0
    %v837 = vpop.f32.mrb[0].mxu0
    %v838 = vadd.f32 0.0, %v837
    %v839 = vpop.f32.mrb[0].mxu0
    %840 = vmatprep.mubr.bf16.mxu0 0
    %841 = vmatmul.mubr.bf16.gmra.mrb[0].mxu0 %v750
    %v842 = vpop.f32.mrb[0].mxu0
    %v843 = vadd.f32 0.0, %v842
    %v844 = vpop.f32.mrb[0].mxu0
    %v845 = vpop.f32.mrb[0].mxu0
    %v846 = vadd.f32 0.0, %v845
    %v847 = vpop.f32.mrb[0].mxu0
    %848 = vdwg.mxu0
    %v849 = vpack.c.bf16 %v790, %v787
    %v850 = vpack.c.bf16 %v798, %v795
    %v851 = vpack.c.bf16 %v806, %v803
    %v852 = vpack.c.bf16 %v814, %v811
    %v853 = vpack.c.bf16 %v822, %v819
    %v854 = vpack.c.bf16 %v830, %v827
    %v855 = vpack.c.bf16 %v838, %v835
    %v856 = vpack.c.bf16 %v846, %v843
    %v865 = vunpack.c.l.b16 %v849
    %v866 = vunpack.c.h.b16 %v849
    %v867 = vunpack.c.l.b16 %v850
    %v868 = vunpack.c.h.b16 %v850
    %v869 = vunpack.c.l.b16 %v851
    %v870 = vunpack.c.h.b16 %v851
    %v871 = vunpack.c.l.b16 %v852
    %v872 = vunpack.c.h.b16 %v852
    %v873 = vunpack.c.l.b16 %v853
    %v874 = vunpack.c.h.b16 %v853
    %v875 = vunpack.c.l.b16 %v854
    %v876 = vunpack.c.h.b16 %v854
    %v877 = vunpack.c.l.b16 %v855
    %v878 = vunpack.c.h.b16 %v855
    %v879 = vunpack.c.l.b16 %v856
    %v880 = vunpack.c.h.b16 %v856
    %v881 = vpack.c.b16 %v865, %v865
    %v882 = vpack.c.b16 %v866, %v866
    %v883 = vpack.c.b16 %v867, %v867
    %v884 = vpack.c.b16 %v868, %v868
    %v885 = vpack.c.b16 %v869, %v869
    %v886 = vpack.c.b16 %v870, %v870
    %v887 = vpack.c.b16 %v871, %v871
    %v888 = vpack.c.b16 %v872, %v872
    %v889 = vpack.c.b16 %v873, %v873
    %v890 = vpack.c.b16 %v874, %v874
    %v891 = vpack.c.b16 %v875, %v875
    %v892 = vpack.c.b16 %v876, %v876
    %v893 = vpack.c.b16 %v877, %v877
    %v894 = vpack.c.b16 %v878, %v878
    %v895 = vpack.c.b16 %v879, %v879
    %v896 = vpack.c.b16 %v880, %v880
    %vm913 = vcmask 125952
    %914 = vst.msk [vmem:[%s9] sm:$0xf] %vm913, %v881
    %915 = vst.msk [vmem:[%s9 + $0x4] sm:$0xf] %vm913, %v882
    %916 = vst.msk [vmem:[%s9 + $0x8] sm:$0xf] %vm913, %v883
    %917 = vst.msk [vmem:[%s9 + $0xc] sm:$0xf] %vm913, %v884
    %918 = vst.msk [vmem:[%s9 + $0x10] sm:$0xf] %vm913, %v885
    %919 = vst.msk [vmem:[%s9 + $0x14] sm:$0xf] %vm913, %v886
    %920 = vst.msk [vmem:[%s9 + $0x18] sm:$0xf] %vm913, %v887
    %921 = vst.msk [vmem:[%s9 + $0x1c] sm:$0xf] %vm913, %v888
    %922 = vst.msk [vmem:[%s9 + $0x20] sm:$0xf] %vm913, %v889
    %923 = vst.msk [vmem:[%s9 + $0x24] sm:$0xf] %vm913, %v890
    %924 = vst.msk [vmem:[%s9 + $0x28] sm:$0xf] %vm913, %v891
    %925 = vst.msk [vmem:[%s9 + $0x2c] sm:$0xf] %vm913, %v892
    %926 = vst.msk [vmem:[%s9 + $0x30] sm:$0xf] %vm913, %v893
    %927 = vst.msk [vmem:[%s9 + $0x34] sm:$0xf] %vm913, %v894
    %928 = vst.msk [vmem:[%s9 + $0x38] sm:$0xf] %vm913, %v895
    %929 = vst.msk [vmem:[%s9 + $0x3c] sm:$0xf] %vm913, %v896
    %v930 = vld [vmem:[%s7] sm:$0xf]
    %v931 = vld [vmem:[%s7 + $0x4] sm:$0xf]
    %v932 = vld [vmem:[%s7 + $0x8] sm:$0xf]
    %v933 = vld [vmem:[%s7 + $0xc] sm:$0xf]
    %v934 = vld [vmem:[%s8] sm:$0x1]
    %v936 = vlaneseq
    %v937 = vshrl.u32 %v936, 7
    %v938 = vsub.s32 0, %v937
    %v939 = vrot.slane %v934, %v938
    %v945 = vunpack.c.l.b16 %v930
    %v946 = vunpack.c.l.b16 %v931
    %v947 = vunpack.c.l.b16 %v932
    %v948 = vunpack.c.l.b16 %v933
    %v949 = vpack.c.b16 %v946, %v945
    %v950 = vpack.c.b16 %v948, %v947
    %953 = vmatprep.subr.bf16.mxu0 0
    %954 = vmatpush1.bf16.msra.mxu0 %v949
    %955 = vmatprep.subr.bf16.mxu0 0
    %956 = vmatpush1.bf16.msra.mxu0 %v950
    %957 = vmatprep.subr.bf16.mxu0 0
    %958 = vmatpush1.bf16.msra.mxu0 0
    %959 = vmatprep.subr.bf16.mxu0 0
    %960 = vmatpush1.bf16.msra.mxu0 0
    %961 = vmatprep.subr.bf16.mxu0 0
    %962 = vmatpush1.bf16.msra.mxu0 0
    %963 = vmatprep.subr.bf16.mxu0 0
    %964 = vmatpush1.bf16.msra.mxu0 0
    %965 = vmatprep.subr.bf16.mxu0 0
    %966 = vmatpush1.bf16.msra.mxu0 0
    %967 = vmatprep.subr.bf16.mxu0 0
    %968 = vmatpush1.bf16.msra.mxu0 0
    %969 = vmatprep.subr.bf16.mxu0 0
    %970 = vmatpush1.bf16.msra.mxu0 0
    %971 = vmatprep.subr.bf16.mxu0 0
    %972 = vmatpush1.bf16.msra.mxu0 0
    %973 = vmatprep.subr.bf16.mxu0 0
    %974 = vmatpush1.bf16.msra.mxu0 0
    %975 = vmatprep.subr.bf16.mxu0 0
    %976 = vmatpush1.bf16.msra.mxu0 0
    %977 = vmatprep.subr.bf16.mxu0 0
    %978 = vmatpush1.bf16.msra.mxu0 0
    %979 = vmatprep.subr.bf16.mxu0 0
    %980 = vmatpush1.bf16.msra.mxu0 0
    %981 = vmatprep.subr.bf16.mxu0 0
    %982 = vmatpush1.bf16.msra.mxu0 0
    %983 = vmatprep.subr.bf16.mxu0 0
    %984 = vmatpush1.bf16.msra.mxu0 0
    %985 = vmatprep.mubr.bf16.mxu0 0
    %986 = vmatmul.mubr.bf16.gmra.mrb[0].mxu0 %v729
    %v987 = vpop.f32.mrb[0].mxu0
    %v988 = vadd.f32 %v939, %v987
    %v989 = vpop.f32.mrb[0].mxu0
    %v990 = vpop.f32.mrb[0].mxu0
    %v991 = vadd.f32 %v939, %v990
    %v992 = vpop.f32.mrb[0].mxu0
    %993 = vmatprep.mubr.bf16.mxu0 0
    %994 = vmatmul.mubr.bf16.gmra.mrb[0].mxu0 %v732
    %v995 = vpop.f32.mrb[0].mxu0
    %v996 = vadd.f32 %v939, %v995
    %v997 = vpop.f32.mrb[0].mxu0
    %v998 = vpop.f32.mrb[0].mxu0
    %v999 = vadd.f32 %v939, %v998
    %v1000 = vpop.f32.mrb[0].mxu0
    %1001 = vmatprep.mubr.bf16.mxu0 0
    %1002 = vmatmul.mubr.bf16.gmra.mrb[0].mxu0 %v735
    %v1003 = vpop.f32.mrb[0].mxu0
    %v1004 = vadd.f32 %v939, %v1003
    %v1005 = vpop.f32.mrb[0].mxu0
    %v1006 = vpop.f32.mrb[0].mxu0
    %v1007 = vadd.f32 %v939, %v1006
    %v1008 = vpop.f32.mrb[0].mxu0
    %1009 = vmatprep.mubr.bf16.mxu0 0
    %1010 = vmatmul.mubr.bf16.gmra.mrb[0].mxu0 %v738
    %v1011 = vpop.f32.mrb[0].mxu0
    %v1012 = vadd.f32 %v939, %v1011
    %v1013 = vpop.f32.mrb[0].mxu0
    %v1014 = vpop.f32.mrb[0].mxu0
    %v1015 = vadd.f32 %v939, %v1014
    %v1016 = vpop.f32.mrb[0].mxu0
    %1017 = vmatprep.mubr.bf16.mxu0 0
    %1018 = vmatmul.mubr.bf16.gmra.mrb[0].mxu0 %v741
    %v1019 = vpop.f32.mrb[0].mxu0
    %v1020 = vadd.f32 %v939, %v1019
    %v1021 = vpop.f32.mrb[0].mxu0
    %v1022 = vpop.f32.mrb[0].mxu0
    %v1023 = vadd.f32 %v939, %v1022
    %v1024 = vpop.f32.mrb[0].mxu0
    %1025 = vmatprep.mubr.bf16.mxu0 0
    %1026 = vmatmul.mubr.bf16.gmra.mrb[0].mxu0 %v744
    %v1027 = vpop.f32.mrb[0].mxu0
    %v1028 = vadd.f32 %v939, %v1027
    %v1029 = vpop.f32.mrb[0].mxu0
    %v1030 = vpop.f32.mrb[0].mxu0
    %v1031 = vadd.f32 %v939, %v1030
    %v1032 = vpop.f32.mrb[0].mxu0
    %1033 = vmatprep.mubr.bf16.mxu0 0
    %1034 = vmatmul.mubr.bf16.gmra.mrb[0].mxu0 %v747
    %v1035 = vpop.f32.mrb[0].mxu0
    %v1036 = vadd.f32 %v939, %v1035
    %v1037 = vpop.f32.mrb[0].mxu0
    %v1038 = vpop.f32.mrb[0].mxu0
    %v1039 = vadd.f32 %v939, %v1038
    %v1040 = vpop.f32.mrb[0].mxu0
    %1041 = vmatprep.mubr.bf16.mxu0 0
    %1042 = vmatmul.mubr.bf16.gmra.mrb[0].mxu0 %v750
    %v1043 = vpop.f32.mrb[0].mxu0
    %v1044 = vadd.f32 %v939, %v1043
    %v1045 = vpop.f32.mrb[0].mxu0
    %v1046 = vpop.f32.mrb[0].mxu0
    %v1047 = vadd.f32 %v939, %v1046
    %v1048 = vpop.f32.mrb[0].mxu0
    %1049 = vdwg.mxu0
    %v1050 = vpack.c.bf16 %v991, %v988
    %v1051 = vpack.c.bf16 %v999, %v996
    %v1052 = vpack.c.bf16 %v1007, %v1004
    %v1053 = vpack.c.bf16 %v1015, %v1012
    %v1054 = vpack.c.bf16 %v1023, %v1020
    %v1055 = vpack.c.bf16 %v1031, %v1028
    %v1056 = vpack.c.bf16 %v1039, %v1036
    %v1057 = vpack.c.bf16 %v1047, %v1044
    %v1066 = vunpack.c.l.b16 %v1050
    %v1067 = vunpack.c.h.b16 %v1050
    %v1068 = vunpack.c.l.b16 %v1051
    %v1069 = vunpack.c.h.b16 %v1051
    %v1070 = vunpack.c.l.b16 %v1052
    %v1071 = vunpack.c.h.b16 %v1052
    %v1072 = vunpack.c.l.b16 %v1053
    %v1073 = vunpack.c.h.b16 %v1053
    %v1074 = vunpack.c.l.b16 %v1054
    %v1075 = vunpack.c.h.b16 %v1054
    %v1076 = vunpack.c.l.b16 %v1055
    %v1077 = vunpack.c.h.b16 %v1055
    %v1078 = vunpack.c.l.b16 %v1056
    %v1079 = vunpack.c.h.b16 %v1056
    %v1080 = vunpack.c.l.b16 %v1057
    %v1081 = vunpack.c.h.b16 %v1057
    %v1082 = vpack.c.b16 %v1066, %v1066
    %v1083 = vpack.c.b16 %v1067, %v1067
    %v1084 = vpack.c.b16 %v1068, %v1068
    %v1085 = vpack.c.b16 %v1069, %v1069
    %v1086 = vpack.c.b16 %v1070, %v1070
    %v1087 = vpack.c.b16 %v1071, %v1071
    %v1088 = vpack.c.b16 %v1072, %v1072
    %v1089 = vpack.c.b16 %v1073, %v1073
    %v1090 = vpack.c.b16 %v1074, %v1074
    %v1091 = vpack.c.b16 %v1075, %v1075
    %v1092 = vpack.c.b16 %v1076, %v1076
    %v1093 = vpack.c.b16 %v1077, %v1077
    %v1094 = vpack.c.b16 %v1078, %v1078
    %v1095 = vpack.c.b16 %v1079, %v1079
    %v1096 = vpack.c.b16 %v1080, %v1080
    %v1097 = vpack.c.b16 %v1081, %v1081
    %1114 = vst.msk [vmem:[%s10] sm:$0xf] %vm913, %v1082
    %1115 = vst.msk [vmem:[%s10 + $0x4] sm:$0xf] %vm913, %v1083
    %1116 = vst.msk [vmem:[%s10 + $0x8] sm:$0xf] %vm913, %v1084
    %1117 = vst.msk [vmem:[%s10 + $0xc] sm:$0xf] %vm913, %v1085
    %1118 = vst.msk [vmem:[%s10 + $0x10] sm:$0xf] %vm913, %v1086
    %1119 = vst.msk [vmem:[%s10 + $0x14] sm:$0xf] %vm913, %v1087
    %1120 = vst.msk [vmem:[%s10 + $0x18] sm:$0xf] %vm913, %v1088
    %1121 = vst.msk [vmem:[%s10 + $0x1c] sm:$0xf] %vm913, %v1089
    %1122 = vst.msk [vmem:[%s10 + $0x20] sm:$0xf] %vm913, %v1090
    %1123 = vst.msk [vmem:[%s10 + $0x24] sm:$0xf] %vm913, %v1091
    %1124 = vst.msk [vmem:[%s10 + $0x28] sm:$0xf] %vm913, %v1092
    %1125 = vst.msk [vmem:[%s10 + $0x2c] sm:$0xf] %vm913, %v1093
    %1126 = vst.msk [vmem:[%s10 + $0x30] sm:$0xf] %vm913, %v1094
    %1127 = vst.msk [vmem:[%s10 + $0x34] sm:$0xf] %vm913, %v1095
    %1128 = vst.msk [vmem:[%s10 + $0x38] sm:$0xf] %vm913, %v1096
    %1129 = vst.msk [vmem:[%s10 + $0x3c] sm:$0xf] %vm913, %v1097
  $region45: #{tpu_custom_call.1} parent=0 // pred_fallthru
    _
  // Predicated region
  $region46: #{tpu_custom_call.1} parent=0 // pred_check
    _
  $region47: #{tpu_custom_call.1} parent=0 // pred_check_branch
    %1131 = sbr.rel (0) target = $region49
  $region48: #{tpu_custom_call.1} parent=0 // pred_region
    _
  $region49: #{tpu_custom_call.1} parent=0 // pred_fallthru
    _
  // Predicated region
  $region50: #{tpu_custom_call.1} parent=0 // pred_check
    _
  $region51: #{tpu_custom_call.1} parent=0 // pred_check_branch
    %1133 = sbr.rel (0) target = $region53
  $region52: #{tpu_custom_call.1} parent=0 // pred_region
    _
  $region53: #{tpu_custom_call.1} parent=0 // pred_fallthru
    _
  // Predicated region
  $region54: #{tpu_custom_call.1} parent=0 // pred_check
    _
  $region55: #{tpu_custom_call.1} parent=0 // pred_check_branch
    %1135 = sbr.rel (0) target = $region57
  $region56: #{tpu_custom_call.1} parent=0 // pred_region
    _
  $region57: #{tpu_custom_call.1} parent=0 // pred_fallthru
    _
  // Predicated region
  $region58: #{tpu_custom_call.1} parent=0 // pred_check
    _
  $region59: #{tpu_custom_call.1} parent=0 // pred_check_branch
    %1137 = sbr.rel (0) target = $region61
  $region60: #{tpu_custom_call.1} parent=0 // pred_region
    _
  $region61: #{tpu_custom_call.1} parent=0 // pred_fallthru
    _

</llo_original>
